<compile_context>
chip_gen: v7x
topology: tpu7x:2x2x1
jax: 0.10.0
libtpu: 0.0.40
codegen_flags: <defaults>
</compile_context>

<pallas_src>
import jax
import jax.numpy as jnp
from jax.experimental import pallas as pl
from jax.experimental.pallas import tpu as pltpu

_LANE = 128
_TARGET_BLOCK_BYTES = 8 * 1024 * 1024  # ~8 MiB of I/O per grid step


def _tpu_generation() -> int:
    """Best-effort TPU generation (5 / 6 / 7 / ...). Conservative fallback: 5."""
    try:
        kind = jax.devices()[0].device_kind.lower()
    except Exception:
        return 5
    for g in (7, 6, 5, 4):
        if f"v{g}" in kind:
            return g
    return 5


def _make_mish_kernel(compute_dtype, approx_recip):
    def kernel(x_ref, o_ref):
        x = x_ref[...].astype(compute_dtype)
        # tanh(softplus(x)) = p / (p + 2)  with  p = t*(t+2),  t = exp(x).
        # Clamp at 20: tanh(softplus(20)) == 1.0 to f32 precision and t*t stays
        # far inside the f32/bf16 range (garbage rows of a partial trailing
        # block therefore cannot fault either).
        t = jnp.exp(jnp.minimum(x, 20.0))
        p = t * (t + 2.0)
        if approx_recip:
            # Low-precision output: one EUP vrcp (idle slot) instead of an
            # exact divide and its Newton-refinement VALU ops.
            pf = p.astype(jnp.float32)
            inv = pl.reciprocal(pf + 2.0, approx=True)
            y = x.astype(jnp.float32) * (pf * inv)
        else:
            y = x * (p / (p + 2.0))
        o_ref[...] = y.astype(o_ref.dtype)

    return kernel


def _mish_flat_pallas(x_flat, n, gen):
    """Mish on a flat array whose length n is a multiple of 128."""
    dtype = x_flat.dtype
    itemsize = jnp.dtype(dtype).itemsize

    # Lane-dense 2D slab: widest column count that divides n exactly.
    cols = next(c for c in (2048, 1024, 512, 256, 128) if n % c == 0)
    rows = n // cols
    x2d = x_flat.reshape(rows, cols)

    # ~8 MiB of I/O per grid step; rows rounded to 32 (covers f32/bf16 packing).
    br = max(32, (_TARGET_BLOCK_BYTES // (cols * itemsize)) // 32 * 32)
    block_rows = min(br, rows)
    # Ensure >= 2 grid steps when splittable: lets the "parallel" axis shard
    # across v7x's two TensorCores and gives the DMA pipeline overlap.
    if block_rows == rows and rows >= 64:
        block_rows = ((rows + 1) // 2 + 31) // 32 * 32

    # bf16 chain stays in bf16 on bf16-native VPU/EUP chips (v6e+); f32 elsewhere
    # (v5e has no bf16 VPU/EUP).
    if jnp.dtype(dtype) == jnp.dtype(jnp.bfloat16) and gen >= 6:
        compute_dtype = jnp.bfloat16
    else:
        compute_dtype = jnp.float32
    # Approximate reciprocal only when the output dtype cannot resolve its
    # ~1e-4 relative error (keeps the f32 path bit-accurate to ~1 ULP).
    approx_recip = jnp.dtype(dtype) in (jnp.dtype(jnp.bfloat16), jnp.dtype(jnp.float16))

    # (in + out) x double-buffer = 4 x 8 MiB = 32 MiB of buffering; budget the
    # scoped VMEM limit per generation (v7x TC: 64 MiB physical; v5e/v6e: 128).
    vmem_limit = {5: 40, 6: 64, 7: 48}.get(gen, 48) * 1024 * 1024

    out2d = pl.pallas_call(
        _make_mish_kernel(compute_dtype, approx_recip),
        out_shape=jax.ShapeDtypeStruct((rows, cols), dtype),
        grid_spec=pltpu.PrefetchScalarGridSpec(
            num_scalar_prefetch=0,
            grid=(pl.cdiv(rows, block_rows),),
            in_specs=[pl.BlockSpec((block_rows, cols), lambda i: (i, 0))],
            out_specs=pl.BlockSpec((block_rows, cols), lambda i: (i, 0)),
        ),
        compiler_params=pltpu.CompilerParams(
            dimension_semantics=("parallel",),
            vmem_limit_bytes=vmem_limit,
        ),
        cost_estimate=pl.CostEstimate(
            flops=6 * n,
            transcendentals=2 * n,
            bytes_accessed=2 * n * itemsize,
        ),
        # Same shape+dtype in/out: let XLA alias/donate the activation buffer
        # when the input is dead after this op (halves peak HBM footprint).
        input_output_aliases={0: 0},
    )(x2d)
    return out2d.reshape(-1)


def _mish_jnp(x):
    """Plain-jnp Mish (same rewrite) for sub-128-element tails."""
    xf = x.astype(jnp.float32)
    t = jnp.exp(jnp.minimum(xf, 20.0))
    p = t * (t + 2.0)
    return (xf * (p / (p + 2.0))).astype(x.dtype)


@jax.jit
def mish(x: jax.Array) -> jax.Array:
    """Mish(x) = x * tanh(log(1 + exp(x))), elementwise, via a Pallas TPU kernel."""
    orig_shape = x.shape
    n = x.size
    if n == 0:
        return x
    gen = _tpu_generation()
    x_flat = jnp.ravel(x)
    tail = n % _LANE
    n_main = n - tail
    if n_main == 0:
        # Fewer than 128 elements: not worth a kernel launch / lane padding.
        return _mish_jnp(x_flat).reshape(orig_shape)
    y_main = _mish_flat_pallas(x_flat[:n_main], n_main, gen)
    if tail == 0:
        return y_main.reshape(orig_shape)
    # Ragged tail (< 128 elems): compute it with plain jnp and stitch, instead
    # of padding + un-padding the whole array through HBM.
    y_tail = _mish_jnp(x_flat[n_main:])
    return jnp.concatenate([y_main, y_tail]).reshape(orig_shape)


if __name__ == "__main__":
    def ref_mish(x):
        xf = x.astype(jnp.float32)
        return xf * jnp.tanh(jnp.log(1.0 + jnp.exp(xf)))

    key = jax.random.PRNGKey(0)
    k1, k2, k3, k4, k5 = jax.random.split(key, 5)

    # 1) NCHW activation, lane-aligned size (matches typical conv-block usage).
    x1 = jax.random.normal(k1, (2, 4, 16, 16), dtype=jnp.float32)
    y1 = jax.block_until_ready(mish(x1))
    assert y1.shape == x1.shape and y1.dtype == x1.dtype
    assert jnp.allclose(y1, ref_mish(x1), atol=1e-5, rtol=1e-5)

    # 2) Larger tensor: multi-block grid (exercises the two-TensorCore split).
    x2 = jax.random.normal(k2, (4, 16, 64, 64), dtype=jnp.float32)
    y2 = jax.block_until_ready(mish(x2))
    assert y2.shape == x2.shape and y2.dtype == x2.dtype
    assert jnp.allclose(y2, ref_mish(x2), atol=1e-5, rtol=1e-5)

    # 3) Ragged size with a <128-element tail (kernel bulk + jnp tail stitch).
    x3 = jax.random.normal(k3, (5, 7, 11), dtype=jnp.float32)
    y3 = jax.block_until_ready(mish(x3))
    assert y3.shape == x3.shape and y3.dtype == x3.dtype
    assert jnp.allclose(y3, ref_mish(x3), atol=1e-5, rtol=1e-5)

    # 4) Tiny tensor (< 128 elements): pure-jnp fallback path.
    x4 = jax.random.normal(k4, (3, 5, 7), dtype=jnp.float32)
    y4 = jax.block_until_ready(mish(x4))
    assert y4.shape == x4.shape and y4.dtype == x4.dtype
    assert jnp.allclose(y4, ref_mish(x4), atol=1e-5, rtol=1e-5)

    # 5) bf16 activations: bf16 compute chain (v6e+) + approximate reciprocal.
    x5 = jax.random.normal(k5, (2, 4, 16, 16), dtype=jnp.bfloat16)
    y5 = jax.block_until_ready(mish(x5))
    assert y5.shape == x5.shape and y5.dtype == x5.dtype
    assert jnp.allclose(y5.astype(jnp.float32), ref_mish(x5), atol=5e-2, rtol=5e-2)

    print("KERNEL_OK")
</pallas_src>

<mosaic_0001>
module attributes {stable_mosaic.version = 11 : i64} {
  func.func @kernel(%arg0: i32, %arg1: memref<1x2048xf32, #tpu.memory_space<vmem>>, %arg2: memref<1x2048xf32, #tpu.memory_space<vmem>>) attributes {dimension_semantics = [#tpu.dimension_semantics<parallel>], iteration_bounds = array<i64: 1>, scalar_prefetch = 0 : i64, scratch_operands = 0 : i64, tpu.core_type = #tpu.core_type<tc>, window_params = [{transform_indices = @transform_0, window_bounds = array<i64: 1, 2048>}, {transform_indices = @transform_1, window_bounds = array<i64: 1, 2048>}]} {
    %c0 = arith.constant 0 : index
    %c0_0 = arith.constant 0 : index
    %0 = vector.load %arg1[%c0, %c0_0] : memref<1x2048xf32, #tpu.memory_space<vmem>>, vector<1x2048xf32>
    %cst = arith.constant 2.000000e+01 : f32
    %1 = vector.broadcast %cst : f32 to vector<1x2048xf32>
    %2 = arith.minimumf %0, %1 : vector<1x2048xf32>
    %3 = math.exp %2 : vector<1x2048xf32>
    %cst_1 = arith.constant 2.000000e+00 : f32
    %4 = vector.broadcast %cst_1 : f32 to vector<1x2048xf32>
    %5 = arith.addf %3, %4 : vector<1x2048xf32>
    %6 = arith.mulf %3, %5 : vector<1x2048xf32>
    %cst_2 = arith.constant 2.000000e+00 : f32
    %7 = vector.broadcast %cst_2 : f32 to vector<1x2048xf32>
    %8 = arith.addf %6, %7 : vector<1x2048xf32>
    %9 = arith.divf %6, %8 : vector<1x2048xf32>
    %10 = arith.mulf %0, %9 : vector<1x2048xf32>
    %c0_3 = arith.constant 0 : index
    %c0_4 = arith.constant 0 : index
    %11 = vector.load %arg2[%c0_3, %c0_4] : memref<1x2048xf32, #tpu.memory_space<vmem>>, vector<1x2048xf32>
    tpu.vector_store %arg2[%c0_3, %c0_4], %10 {strides = array<i32>} : memref<1x2048xf32, #tpu.memory_space<vmem>>, vector<1x2048xf32>,
    return
  }
  func.func @transform_0(%arg0: i32) -> (i32, i32) {
    %c0_i32 = arith.constant 0 : i32
    %c0_i32_0 = arith.constant 0 : i32
    return %arg0, %c0_i32 : i32, i32
  }
  func.func @transform_1(%arg0: i32) -> (i32, i32) {
    %c0_i32 = arith.constant 0 : i32
    %c0_i32_0 = arith.constant 0 : i32
    return %arg0, %c0_i32 : i32, i32
  }
}

</mosaic_0001>

<llo_original>
// kernel: mish.1
$region0: #{mish.1}
  #allocation0 [shape = 'u32[]', space=smem, size = 0x4, offset = 0x4, fixed_abs, tag = 'smem constant byte address 0x4 - core index']
  #allocation1 [shape = 'u32[144,128]{1,0:T(1,128)}', space=vmem, size = 0x12000, scoped, tag = 'internal scratch']
  %s0 = inlined_call_operand.vmem [shape: f32[1,2048], index: 0, kind: input, shape index: {}, may-alias: {0,1}]
  %s1 = inlined_call_operand.vmem [shape: f32[1,2048], index: 1, kind: output, shape index: {}, may-alias: {0,1}]
  %s2 = sld [smem:[#allocation0]]
  $region14: #{mish.1} parent=0
    _
  %s4 = ssub.s32 1, %s2
  %s5 = scalar_select 0, %s4, %s2
  // Predicated region
  $region2: #{mish.1} parent=0 // pred_check
    _
  $region3: #{mish.1} parent=0 // pred_check_branch
    %7 = sbr.rel (0) target = $region5
  $region4: #{mish.1} parent=0 // pred_region
    _
  $region5: #{mish.1} parent=0 // pred_fallthru
    _
  %v8 = vld [vmem:[%s0] sm:$0xff]
  %v9 = vld [vmem:[%s0 + $0x8] sm:$0xff]
  %v10 = vmin.f32 %v8, 20.0
  %v11 = vmin.f32 %v9, 20.0
  %v12 = vmul.f32 %v10, 1.442695
  %v13 = vpow.pop %v12
  %v14 = vmul.f32 %v11, 1.442695
  %v15 = vpow.pop %v14
  %v16 = vadd.f32 %v13, 2.0
  %v17 = vadd.f32 %v15, 2.0
  %v18 = vmul.f32 %v13, %v16
  %v19 = vmul.f32 %v15, %v17
  %v20 = vadd.f32 %v18, 2.0
  %v21 = vadd.f32 %v19, 2.0
  %v22 = vrcp.pop %v20
  %v23 = vmul.f32 %v18, %v22
  %v24 = vrcp.pop %v21
  %v25 = vmul.f32 %v19, %v24
  %v26 = vmul.f32 %v8, %v23
  %v27 = vmul.f32 %v9, %v25
  %28 = vst [vmem:[%s1] sm:$0xff] %v26
  %29 = vst [vmem:[%s1 + $0x8] sm:$0xff] %v27
  // Predicated region
  $region6: #{mish.1} parent=0 // pred_check
    _
  $region7: #{mish.1} parent=0 // pred_check_branch
    %31 = sbr.rel (0) target = $region9
  $region8: #{mish.1} parent=0 // pred_region
    _
  $region9: #{mish.1} parent=0 // pred_fallthru
    _
  // Predicated region
  $region10: #{mish.1} parent=0 // pred_check
    _
  $region11: #{mish.1} parent=0 // pred_check_branch
    %33 = sbr.rel (0) target = $region13
  $region12: #{mish.1} parent=0 // pred_region
    _
  $region13: #{mish.1} parent=0 // pred_fallthru
    _

</llo_original>
